<compile_context>
chip_gen: v7x
topology: tpu7x:2x2x1
jax: 0.10.0
libtpu: 0.0.40
codegen_flags: <defaults>
</compile_context>

<pallas_src>
import jax
import jax.numpy as jnp
from jax.experimental import pallas as pl
from jax.experimental.pallas import tpu as pltpu  # noqa: F401  (kept for TPU-specific params if needed)

LANE = 128


def _round_up(x, m):
    return (x + m - 1) // m * m


def _gcn0_fused_kernel(ag_ref, am_ref, x_ref, w1_ref, b1_ref, w2_ref, b2_ref, o_ref):
    """Fused GraphConv -> ReLU -> SAGEConv('mean').  H1 stays resident in VMEM.

    ag_ref : (N, N)      bf16  D^-1/2 A D^-1/2        (GraphConv 'both' norm)
    am_ref : (N, N)      bf16  row(in-degree)-normalized A (mean aggregator)
    x_ref  : (N, Fin)    f32   node features
    w1_ref : (Fin, H)    f32   GraphConv weight
    b1_ref : (1, H)      f32   GraphConv bias
    w2_ref : (H, 2*Fp)   f32   [W_self | W_neigh], each zero-padded to Fp lanes
    b2_ref : (1, Fp)     f32   SAGE bias (zero-padded)
    o_ref  : (N, Fp)     f32   padded logits (sliced to num_outputs outside)
    """
    fp = o_ref.shape[-1]

    # ---------------- conv1: GraphConv(norm='both') + ReLU -------------------
    # Fin (3) < H (150): aggregate first (N^2 * Fin MACs), then project.
    x_bf = x_ref[...].astype(ag_ref.dtype)
    agg1 = jnp.dot(ag_ref[...], x_bf, preferred_element_type=jnp.float32)      # (N, Fin)
    h1 = jnp.dot(agg1, w1_ref[...], preferred_element_type=jnp.float32) + b1_ref[...]
    h1 = jnp.maximum(h1, 0.0)                                                   # (N, H)

    # ---------------- conv2: SAGEConv('mean') --------------------------------
    # Fout (7 -> Fp=128) < H (150): project first, then aggregate, so the N^2
    # matmul contracts over Fp instead of H.  One K=H matmul produces both the
    # self and neighbor projections (concatenated weight).
    proj = jnp.dot(h1, w2_ref[...], preferred_element_type=jnp.float32)         # (N, 2*Fp)
    h_self = proj[:, :fp]
    p_neigh = proj[:, fp:].astype(am_ref.dtype)
    neigh = jnp.dot(am_ref[...], p_neigh, preferred_element_type=jnp.float32)   # (N, Fp)
    o_ref[...] = (h_self + neigh + b2_ref[...]).astype(o_ref.dtype)


def gcn0_forward(adj_gcn, adj_mean, x, params):
    """Fused forward.  adj_*: (N, N) f32, x: (N, Fin) f32."""
    n = x.shape[0]
    num_out = params["w_self2"].shape[1]
    fp = _round_up(max(num_out, 1), LANE)  # lane-dense output width
    pad = fp - num_out

    # Zero-pad the SAGE weights/bias to a multiple of 128 output lanes and
    # concatenate [W_self | W_neigh] for a single K=H projection matmul.
    # Padded columns are exactly zero, so slicing back is exact.
    ws2 = jnp.pad(params["w_self2"], ((0, 0), (0, pad)))
    wn2 = jnp.pad(params["w_neigh2"], ((0, 0), (0, pad)))
    w2 = jnp.concatenate([ws2, wn2], axis=1)          # (H, 2*Fp)
    b2 = jnp.pad(params["b2"], ((0, 0), (0, pad)))    # (1, Fp)

    # bf16 adjacency operands: half the HBM bytes for the dominant (N,N)
    # arrays and native MXU bf16; accumulation stays in f32 inside the kernel.
    ag = adj_gcn.astype(jnp.bfloat16)
    am = adj_mean.astype(jnp.bfloat16)

    # Tiny problem (N=128): every operand is one full-extent block resident in
    # VMEM (total ~600 KiB), single kernel invocation.
    # TODO(synk): for large N, switch to a row-tiled grid (TM x N adjacency
    # blocks, dimension_semantics=("parallel",)) with generation-specific tile
    # sizes (v7x has 64 MiB VMEM vs 128 MiB on v5e/v6e).
    full = lambda shape: pl.BlockSpec(shape, lambda: (0,) * len(shape))
    out_pad = pl.pallas_call(
        _gcn0_fused_kernel,
        out_shape=jax.ShapeDtypeStruct((n, fp), jnp.float32),
        grid=(),
        in_specs=[
            full(ag.shape),
            full(am.shape),
            full(x.shape),
            full(params["w1"].shape),
            full(params["b1"].shape),
            full(w2.shape),
            full(b2.shape),
        ],
        out_specs=full((n, fp)),
    )(ag, am, x, params["w1"], params["b1"], w2, b2)
    return out_pad[:, :num_out]


def init_params(key, in_feats, h_feats, num_outputs):
    k1, k2, k3 = jax.random.split(key, 3)
    scale = 0.1
    return {
        # conv1 = dglnn.GraphConv(in_feats, h_feats, norm='both'): one weight + bias.
        "w1": scale * jax.random.normal(k1, (in_feats, h_feats), jnp.float32),
        "b1": jnp.zeros((1, h_feats), jnp.float32),
        # conv2 = dglnn.SAGEConv(h_feats, num_outputs, 'mean'): fc_self, fc_neigh, bias.
        "w_self2": scale * jax.random.normal(k2, (h_feats, num_outputs), jnp.float32),
        "w_neigh2": scale * jax.random.normal(k3, (h_feats, num_outputs), jnp.float32),
        "b2": jnp.zeros((1, num_outputs), jnp.float32),
    }


def make_graph(key, n_nodes, edge_prob=0.05):
    """Deterministic random directed graph -> (A_gcn, A_mean) dense normalized adjacencies."""
    adj = (jax.random.uniform(key, (n_nodes, n_nodes)) < edge_prob).astype(jnp.float32)
    adj = adj * (1.0 - jnp.eye(n_nodes, dtype=jnp.float32))      # no self loops (DGL default)
    deg_in = jnp.maximum(adj.sum(axis=1, keepdims=True), 1.0)    # (N, 1) destination degree
    deg_out = jnp.maximum(adj.sum(axis=0, keepdims=True), 1.0)   # (1, N) source degree
    a_gcn = adj / jnp.sqrt(deg_in) / jnp.sqrt(deg_out)           # GraphConv norm='both'
    a_mean = adj / deg_in                                        # SAGEConv 'mean'
    return a_gcn, a_mean


if __name__ == "__main__":
    # Shapes implied by the module: in_feats=3, hid_feats=150, out_feats=7, 128 nodes.
    N, IN_FEATS, H_FEATS, NUM_OUT = 128, 3, 150, 7

    key = jax.random.PRNGKey(0)
    k_graph, k_feat, k_param = jax.random.split(key, 3)

    a_gcn, a_mean = make_graph(k_graph, N)
    x = jax.random.normal(k_feat, (N, IN_FEATS), jnp.float32)
    params = init_params(k_param, IN_FEATS, H_FEATS, NUM_OUT)

    out = gcn0_forward(a_gcn, a_mean, x, params)
    out = jax.block_until_ready(out)
    assert out.shape == (N, NUM_OUT), out.shape
    print("KERNEL_OK")
</pallas_src>

<mosaic_0001>
module attributes {stable_mosaic.version = 11 : i64} {
  func.func @_gcn0_fused_kernel(%arg0: memref<128x128xbf16, #tpu.memory_space<vmem>>, %arg1: memref<128x128xbf16, #tpu.memory_space<vmem>>, %arg2: memref<128x3xf32, #tpu.memory_space<vmem>>, %arg3: memref<3x150xf32, #tpu.memory_space<vmem>>, %arg4: memref<1x150xf32, #tpu.memory_space<vmem>>, %arg5: memref<150x256xf32, #tpu.memory_space<vmem>>, %arg6: memref<1x128xf32, #tpu.memory_space<vmem>>, %arg7: memref<128x128xf32, #tpu.memory_space<vmem>>) attributes {dimension_semantics = [], scalar_prefetch = 0 : i64, scratch_operands = 0 : i64, tpu.core_type = #tpu.core_type<tc>} {
    %c0 = arith.constant 0 : index
    %c0_0 = arith.constant 0 : index
    %0 = vector.load %arg2[%c0, %c0_0] : memref<128x3xf32, #tpu.memory_space<vmem>>, vector<128x3xf32>
    %1 = arith.truncf %0 : vector<128x3xf32> to vector<128x3xbf16>
    %c0_1 = arith.constant 0 : index
    %c0_2 = arith.constant 0 : index
    %2 = vector.load %arg0[%c0_1, %c0_2] : memref<128x128xbf16, #tpu.memory_space<vmem>>, vector<128x128xbf16>
    %cst = arith.constant dense<0.000000e+00> : vector<128x3xf32>
    %3 = tpu.matmul %2, %1, %cst {dimension_numbers = #tpu.dot_dimension_numbers<[1], [0], [0], [1], [0, 0, 1, 1], [], []>} : vector<128x128xbf16>, vector<128x3xbf16>, vector<128x3xf32> -> vector<128x3xf32>
    %c0_3 = arith.constant 0 : index
    %c0_4 = arith.constant 0 : index
    %4 = vector.load %arg3[%c0_3, %c0_4] : memref<3x150xf32, #tpu.memory_space<vmem>>, vector<3x150xf32>
    %cst_5 = arith.constant dense<0.000000e+00> : vector<128x150xf32>
    %5 = tpu.matmul %3, %4, %cst_5 {dimension_numbers = #tpu.dot_dimension_numbers<[1], [0], [0], [1], [0, 0, 1, 1], [], []>} : vector<128x3xf32>, vector<3x150xf32>, vector<128x150xf32> -> vector<128x150xf32>
    %c0_6 = arith.constant 0 : index
    %c0_7 = arith.constant 0 : index
    %6 = vector.load %arg4[%c0_6, %c0_7] : memref<1x150xf32, #tpu.memory_space<vmem>>, vector<1x150xf32>
    %7 = vector.broadcast %6 : vector<1x150xf32> to vector<128x150xf32>
    %8 = arith.addf %5, %7 : vector<128x150xf32>
    %cst_8 = arith.constant 0.000000e+00 : f32
    %9 = vector.broadcast %cst_8 : f32 to vector<128x150xf32>
    %10 = arith.maximumf %8, %9 : vector<128x150xf32>
    %c0_9 = arith.constant 0 : index
    %c0_10 = arith.constant 0 : index
    %11 = vector.load %arg5[%c0_9, %c0_10] : memref<150x256xf32, #tpu.memory_space<vmem>>, vector<150x256xf32>
    %cst_11 = arith.constant dense<0.000000e+00> : vector<128x256xf32>
    %12 = tpu.matmul %10, %11, %cst_11 {dimension_numbers = #tpu.dot_dimension_numbers<[1], [0], [0], [1], [0, 0, 1, 1], [], []>} : vector<128x150xf32>, vector<150x256xf32>, vector<128x256xf32> -> vector<128x256xf32>
    %13 = vector.extract_strided_slice %12 {offsets = [0, 0], sizes = [128, 128], strides = [1, 1]} : vector<128x256xf32> to vector<128x128xf32>
    %14 = vector.extract_strided_slice %12 {offsets = [0, 128], sizes = [128, 128], strides = [1, 1]} : vector<128x256xf32> to vector<128x128xf32>
    %15 = arith.truncf %14 : vector<128x128xf32> to vector<128x128xbf16>
    %c0_12 = arith.constant 0 : index
    %c0_13 = arith.constant 0 : index
    %16 = vector.load %arg1[%c0_12, %c0_13] : memref<128x128xbf16, #tpu.memory_space<vmem>>, vector<128x128xbf16>
    %cst_14 = arith.constant dense<0.000000e+00> : vector<128x128xf32>
    %17 = tpu.matmul %16, %15, %cst_14 {dimension_numbers = #tpu.dot_dimension_numbers<[1], [0], [0], [1], [0, 0, 1, 1], [], []>} : vector<128x128xbf16>, vector<128x128xbf16>, vector<128x128xf32> -> vector<128x128xf32>
    %18 = arith.addf %13, %17 : vector<128x128xf32>
    %c0_15 = arith.constant 0 : index
    %c0_16 = arith.constant 0 : index
    %19 = vector.load %arg6[%c0_15, %c0_16] : memref<1x128xf32, #tpu.memory_space<vmem>>, vector<1x128xf32>
    %20 = vector.broadcast %19 : vector<1x128xf32> to vector<128x128xf32>
    %21 = arith.addf %18, %20 : vector<128x128xf32>
    %c0_17 = arith.constant 0 : index
    %c0_18 = arith.constant 0 : index
    %22 = vector.load %arg7[%c0_17, %c0_18] : memref<128x128xf32, #tpu.memory_space<vmem>>, vector<128x128xf32>
    tpu.vector_store %arg7[%c0_17, %c0_18], %21 {strides = array<i32>} : memref<128x128xf32, #tpu.memory_space<vmem>>, vector<128x128xf32>,
    return
  }
}

</mosaic_0001>

<llo_original>
// kernel: tpu_custom_call.1
$region0: #{tpu_custom_call.1}
  #allocation0 [shape = 'u32[]', space=smem, size = 0x4, offset = 0x4, fixed_abs, tag = 'smem constant byte address 0x4 - core index']
  #allocation1 [shape = 'u32[144,128]{1,0:T(1,128)}', space=vmem, size = 0x12000, scoped, tag = 'internal scratch']
  %s0 = inlined_call_operand.vmem [shape: bf16[128,128], index: 0, kind: input, shape index: {}]
  %s1 = inlined_call_operand.vmem [shape: bf16[128,128], index: 1, kind: input, shape index: {}]
  %s2 = inlined_call_operand.vmem [shape: f32[128,3], index: 2, kind: input, shape index: {}]
  %s3 = inlined_call_operand.vmem [shape: f32[3,150], index: 3, kind: input, shape index: {}]
  %s4 = inlined_call_operand.vmem [shape: f32[1,150], index: 4, kind: input, shape index: {}]
  %s5 = inlined_call_operand.hbm [shape: f32[150,256], index: 5, kind: input, shape index: {}]
  %s6 = inlined_call_operand.vmem [shape: f32[1,128], index: 6, kind: input, shape index: {}]
  %s7 = inlined_call_operand.hbm [shape: f32[128,128], index: 7, kind: output, shape index: {}]
  %s8 = sld [smem:[#allocation0]]
  $region42: #{tpu_custom_call.1} parent=0
    _
  %s10 = ssub.s32 1, %s8
  %s11 = scalar_select 0, %s10, %s8
  $region1: #{tpu_custom_call.1} parent=0
    #allocation2 [shape = 'u8[155648]{0}', space=vmem, size = 0x26000, scoped, tag = 'input window, operand 5, single buffered']
    #allocation3 [shape = 's32[1]{0}', space=sflag, size = 0x4, scoped, tag = 'scoped memory for tpu_custom_call.1']
    #allocation4 [shape = 's32[1]{0}', space=sflag, size = 0x4, scoped, tag = 'scoped memory for tpu_custom_call.1']
    #allocation5 [shape = 'u8[65536]{0}', space=vmem, size = 0x10000, scoped, tag = 'output window, operand 0, single buffered']
    %12 = vsyncpa [#allocation3], 0
    %13 = vsyncpa [#allocation4], 0
    // Predicated region
    $region2: #{tpu_custom_call.1} parent=1 // pred_check
      _
    $region3: #{tpu_custom_call.1} parent=1 // pred_check_branch
      %15 = sbr.rel (0) target = $region5
    $region4: #{tpu_custom_call.1} parent=1 // pred_region
      _
    $region5: #{tpu_custom_call.1} parent=1 // pred_fallthru
      _
    // Predicated region
    $region6: #{tpu_custom_call.1} parent=1 // pred_check
      _
    $region7: #{tpu_custom_call.1} parent=1 // pred_check_branch
      %17 = sbr.rel (0) target = $region9
    $region8: #{tpu_custom_call.1} parent=1 // pred_region
      _
    $region9: #{tpu_custom_call.1} parent=1 // pred_fallthru
      _
    // Predicated region
    $region10: #{tpu_custom_call.1} parent=1 // pred_check
      _
    $region11: #{tpu_custom_call.1} parent=1 // pred_check_branch
      %19 = sbr.rel (0) target = $region13
    $region12: #{tpu_custom_call.1} parent=1 // pred_region
      _
    $region13: #{tpu_custom_call.1} parent=1 // pred_fallthru
      _
    // Predicated region
    $region14: #{tpu_custom_call.1} parent=1 // pred_check
      _
    $region15: #{tpu_custom_call.1} parent=1 // pred_check_branch
      %21 = sbr.rel (0) target = $region17
    $region16: #{tpu_custom_call.1} parent=1 // pred_region
      _
    $region17: #{tpu_custom_call.1} parent=1 // pred_fallthru
      _
    // Predicated region
    $region18: #{tpu_custom_call.1} parent=1 // pred_check
      _
    $region19: #{tpu_custom_call.1} parent=1 // pred_check_branch
      %23 = sbr.rel (0) target = $region21
    $region20: #{tpu_custom_call.1} parent=1 // pred_region
      _
    $region21: #{tpu_custom_call.1} parent=1 // pred_fallthru
      _
    // Predicated region
    $region22: #{tpu_custom_call.1} parent=1 // pred_check
      _
    $region23: #{tpu_custom_call.1} parent=1 // pred_check_branch
      %25 = sbr.rel (0) target = $region25
    $region24: #{tpu_custom_call.1} parent=1 // pred_region
      %s27 = ssub.s32 4864, 4864
      %28 = vsyncadd [#allocation3], %s27
      %s29 = sshll.u32 [#allocation2], 4
      %s30 = int_to_ptr.vmem [resolvable:$true] %s29
      %35 = dma.hbm_to_vmem [thread:$0]  %s5, 4864, %s30, [#allocation3], 256, 256, 16
    $region25: #{tpu_custom_call.1} parent=1 // pred_fallthru
      _
    // Predicated region
    $region26: #{tpu_custom_call.1} parent=1 // pred_check
      _
    $region27: #{tpu_custom_call.1} parent=1 // pred_check_branch
      %37 = sbr.rel (0) target = $region29
    $region28: #{tpu_custom_call.1} parent=1 // pred_region
      _
    $region29: #{tpu_custom_call.1} parent=1 // pred_fallthru
      _
    // Predicated region
    $region30: #{tpu_custom_call.1} parent=1 // pred_check
      _
    $region31: #{tpu_custom_call.1} parent=1 // pred_check_branch
      %39 = sbr.rel (0) target = $region33
    $region32: #{tpu_custom_call.1} parent=1 // pred_region
      %40 = dma.done [#allocation3], 4864
    $region33: #{tpu_custom_call.1} parent=1 // pred_fallthru
      _
    %v42 = vld [vmem:[%s2] sm:$0xff]
    %v43 = vld [vmem:[%s2 + $0x8] sm:$0xff]
    %v44 = vld [vmem:[%s2 + $0x10] sm:$0xff]
    %v45 = vld [vmem:[%s2 + $0x18] sm:$0xff]
    %v46 = vld [vmem:[%s2 + $0x20] sm:$0xff]
    %v47 = vld [vmem:[%s2 + $0x28] sm:$0xff]
    %v48 = vld [vmem:[%s2 + $0x30] sm:$0xff]
    %v49 = vld [vmem:[%s2 + $0x38] sm:$0xff]
    %v50 = vld [vmem:[%s2 + $0x40] sm:$0xff]
    %v51 = vld [vmem:[%s2 + $0x48] sm:$0xff]
    %v52 = vld [vmem:[%s2 + $0x50] sm:$0xff]
    %v53 = vld [vmem:[%s2 + $0x58] sm:$0xff]
    %v54 = vld [vmem:[%s2 + $0x60] sm:$0xff]
    %v55 = vld [vmem:[%s2 + $0x68] sm:$0xff]
    %v56 = vld [vmem:[%s2 + $0x70] sm:$0xff]
    %v57 = vld [vmem:[%s2 + $0x78] sm:$0xff]
    %v58 = vpack.c.bf16 %v43, %v42
    %v59 = vpack.c.bf16 %v45, %v44
    %v60 = vpack.c.bf16 %v47, %v46
    %v61 = vpack.c.bf16 %v49, %v48
    %v62 = vpack.c.bf16 %v51, %v50
    %v63 = vpack.c.bf16 %v53, %v52
    %v64 = vpack.c.bf16 %v55, %v54
    %v65 = vpack.c.bf16 %v57, %v56
    %v66 = vld [vmem:[%s0] sm:$0xf]
    %v67 = vld [vmem:[%s0 + $0x4] sm:$0xf]
    %v68 = vld [vmem:[%s0 + $0x8] sm:$0xf]
    %v69 = vld [vmem:[%s0 + $0xc] sm:$0xf]
    %v70 = vld [vmem:[%s0 + $0x10] sm:$0xf]
    %v71 = vld [vmem:[%s0 + $0x14] sm:$0xf]
    %v72 = vld [vmem:[%s0 + $0x18] sm:$0xf]
    %v73 = vld [vmem:[%s0 + $0x1c] sm:$0xf]
    %v74 = vld [vmem:[%s0 + $0x20] sm:$0xf]
    %v75 = vld [vmem:[%s0 + $0x24] sm:$0xf]
    %v76 = vld [vmem:[%s0 + $0x28] sm:$0xf]
    %v77 = vld [vmem:[%s0 + $0x2c] sm:$0xf]
    %v78 = vld [vmem:[%s0 + $0x30] sm:$0xf]
    %v79 = vld [vmem:[%s0 + $0x34] sm:$0xf]
    %v80 = vld [vmem:[%s0 + $0x38] sm:$0xf]
    %v81 = vld [vmem:[%s0 + $0x3c] sm:$0xf]
    %v98 = vunpack.c.l.b16 %v66
    %v99 = vunpack.c.l.b16 %v67
    %v100 = vunpack.c.l.b16 %v68
    %v101 = vunpack.c.l.b16 %v69
    %v102 = vunpack.c.l.b16 %v70
    %v103 = vunpack.c.l.b16 %v71
    %v104 = vunpack.c.l.b16 %v72
    %v105 = vunpack.c.l.b16 %v73
    %v106 = vunpack.c.l.b16 %v74
    %v107 = vunpack.c.l.b16 %v75
    %v108 = vunpack.c.l.b16 %v76
    %v109 = vunpack.c.l.b16 %v77
    %v110 = vunpack.c.l.b16 %v78
    %v111 = vunpack.c.l.b16 %v79
    %v112 = vunpack.c.l.b16 %v80
    %v113 = vunpack.c.l.b16 %v81
    %v114 = vpack.c.b16 %v99, %v98
    %v115 = vpack.c.b16 %v101, %v100
    %v116 = vpack.c.b16 %v103, %v102
    %v117 = vpack.c.b16 %v105, %v104
    %v118 = vpack.c.b16 %v107, %v106
    %v119 = vpack.c.b16 %v109, %v108
    %v120 = vpack.c.b16 %v111, %v110
    %v121 = vpack.c.b16 %v113, %v112
    %130 = vmatprep.subr.bf16.mxu0 0
    %131 = vmatpush1.bf16.msra.mxu0 %v58
    %132 = vmatprep.subr.bf16.mxu0 0
    %133 = vmatpush1.bf16.msra.mxu0 %v59
    %134 = vmatprep.subr.bf16.mxu0 0
    %135 = vmatpush1.bf16.msra.mxu0 %v60
    %136 = vmatprep.subr.bf16.mxu0 0
    %137 = vmatpush1.bf16.msra.mxu0 %v61
    %138 = vmatprep.subr.bf16.mxu0 0
    %139 = vmatpush1.bf16.msra.mxu0 %v62
    %140 = vmatprep.subr.bf16.mxu0 0
    %141 = vmatpush1.bf16.msra.mxu0 %v63
    %142 = vmatprep.subr.bf16.mxu0 0
    %143 = vmatpush1.bf16.msra.mxu0 %v64
    %144 = vmatprep.subr.bf16.mxu0 0
    %145 = vmatpush1.bf16.msra.mxu0 %v65
    %146 = vmatprep.subr.bf16.mxu0 0
    %147 = vmatpush1.bf16.msra.mxu0 0
    %148 = vmatprep.subr.bf16.mxu0 0
    %149 = vmatpush1.bf16.msra.mxu0 0
    %150 = vmatprep.subr.bf16.mxu0 0
    %151 = vmatpush1.bf16.msra.mxu0 0
    %152 = vmatprep.subr.bf16.mxu0 0
    %153 = vmatpush1.bf16.msra.mxu0 0
    %154 = vmatprep.subr.bf16.mxu0 0
    %155 = vmatpush1.bf16.msra.mxu0 0
    %156 = vmatprep.subr.bf16.mxu0 0
    %157 = vmatpush1.bf16.msra.mxu0 0
    %158 = vmatprep.subr.bf16.mxu0 0
    %159 = vmatpush1.bf16.msra.mxu0 0
    %160 = vmatprep.subr.bf16.mxu0 0
    %161 = vmatpush1.bf16.msra.mxu0 0
    %162 = vmatprep.mubr.bf16.mxu0 0
    %163 = vmatmul.mubr.bf16.gmra.mrb[0].mxu0 %v114
    %v164 = vpop.f32.mrb[0].mxu0
    %v165 = vadd.f32 0.0, %v164
    %v166 = vpop.f32.mrb[0].mxu0
    %v167 = vpop.f32.mrb[0].mxu0
    %v168 = vadd.f32 0.0, %v167
    %v169 = vpop.f32.mrb[0].mxu0
    %170 = vmatprep.mubr.bf16.mxu0 0
    %171 = vmatmul.mubr.bf16.gmra.mrb[0].mxu0 %v115
    %v172 = vpop.f32.mrb[0].mxu0
    %v173 = vadd.f32 0.0, %v172
    %v174 = vpop.f32.mrb[0].mxu0
    %v175 = vpop.f32.mrb[0].mxu0
    %v176 = vadd.f32 0.0, %v175
    %v177 = vpop.f32.mrb[0].mxu0
    %178 = vmatprep.mubr.bf16.mxu0 0
    %179 = vmatmul.mubr.bf16.gmra.mrb[0].mxu0 %v116
    %v180 = vpop.f32.mrb[0].mxu0
    %v181 = vadd.f32 0.0, %v180
    %v182 = vpop.f32.mrb[0].mxu0
    %v183 = vpop.f32.mrb[0].mxu0
    %v184 = vadd.f32 0.0, %v183
    %v185 = vpop.f32.mrb[0].mxu0
    %186 = vmatprep.mubr.bf16.mxu0 0
    %187 = vmatmul.mubr.bf16.gmra.mrb[0].mxu0 %v117
    %v188 = vpop.f32.mrb[0].mxu0
    %v189 = vadd.f32 0.0, %v188
    %v190 = vpop.f32.mrb[0].mxu0
    %v191 = vpop.f32.mrb[0].mxu0
    %v192 = vadd.f32 0.0, %v191
    %v193 = vpop.f32.mrb[0].mxu0
    %194 = vmatprep.mubr.bf16.mxu0 0
    %195 = vmatmul.mubr.bf16.gmra.mrb[0].mxu0 %v118
    %v196 = vpop.f32.mrb[0].mxu0
    %v197 = vadd.f32 0.0, %v196
    %v198 = vpop.f32.mrb[0].mxu0
    %v199 = vpop.f32.mrb[0].mxu0
    %v200 = vadd.f32 0.0, %v199
    %v201 = vpop.f32.mrb[0].mxu0
    %202 = vmatprep.mubr.bf16.mxu0 0
    %203 = vmatmul.mubr.bf16.gmra.mrb[0].mxu0 %v119
    %v204 = vpop.f32.mrb[0].mxu0
    %v205 = vadd.f32 0.0, %v204
    %v206 = vpop.f32.mrb[0].mxu0
    %v207 = vpop.f32.mrb[0].mxu0
    %v208 = vadd.f32 0.0, %v207
    %v209 = vpop.f32.mrb[0].mxu0
    %210 = vmatprep.mubr.bf16.mxu0 0
    %211 = vmatmul.mubr.bf16.gmra.mrb[0].mxu0 %v120
    %v212 = vpop.f32.mrb[0].mxu0
    %v213 = vadd.f32 0.0, %v212
    %v214 = vpop.f32.mrb[0].mxu0
    %v215 = vpop.f32.mrb[0].mxu0
    %v216 = vadd.f32 0.0, %v215
    %v217 = vpop.f32.mrb[0].mxu0
    %218 = vmatprep.mubr.bf16.mxu0 0
    %219 = vmatmul.mubr.bf16.gmra.mrb[0].mxu0 %v121
    %v220 = vpop.f32.mrb[0].mxu0
    %v221 = vadd.f32 0.0, %v220
    %v222 = vpop.f32.mrb[0].mxu0
    %v223 = vpop.f32.mrb[0].mxu0
    %v224 = vadd.f32 0.0, %v223
    %v225 = vpop.f32.mrb[0].mxu0
    %226 = vdwg.mxu0
    %v227 = vld [vmem:[%s3] sm:$0x77]
    %v228 = vld [vmem:[%s4] sm:$0x3]
    %v230 = vlaneseq
    %v231 = vshrl.u32 %v230, 7
    %v232 = vsub.s32 0, %v231
    %v233 = vrot.slane %v228, %v232
    %v234 = vlaneseq
    %v235 = vshrl.u32 %v234, 7
    %v236 = vsub.s32 1, %v235
    %v237 = vrot.slane %v228, %v236
    %v241 = vcombine.high %v227, %v227
    %vm242 = vcmask 23552
    %v244 = vsel %vm242, %v165, 0
    %v247 = vsel %vm242, %v168, 0
    %v250 = vsel %vm242, %v173, 0
    %v253 = vsel %vm242, %v176, 0
    %v256 = vsel %vm242, %v181, 0
    %v259 = vsel %vm242, %v184, 0
    %v262 = vsel %vm242, %v189, 0
    %v265 = vsel %vm242, %v192, 0
    %v268 = vsel %vm242, %v197, 0
    %v271 = vsel %vm242, %v200, 0
    %v274 = vsel %vm242, %v205, 0
    %v277 = vsel %vm242, %v208, 0
    %v280 = vsel %vm242, %v213, 0
    %v283 = vsel %vm242, %v216, 0
    %v286 = vsel %vm242, %v221, 0
    %v289 = vsel %vm242, %v224, 0
    %vm291 = vcmask 1042432
    %v292 = vsel %vm291, %v227, 0
    %v294 = vsel %vm291, %v241, 0
    %296 = vmatprep.subr.mxu0 %v294
    %297 = vmatpush1.msra.mxu0 %v292
    %298 = vmatprep.subr.mxu0 0.0
    %299 = vmatpush1.msra.mxu0 0.0
    %300 = vmatprep.subr.mxu0 0.0
    %301 = vmatpush1.msra.mxu0 0.0
    %302 = vmatprep.subr.mxu0 0.0
    %303 = vmatpush1.msra.mxu0 0.0
    %304 = vmatprep.subr.mxu0 0.0
    %305 = vmatpush1.msra.mxu0 0.0
    %306 = vmatprep.subr.mxu0 0.0
    %307 = vmatpush1.msra.mxu0 0.0
    %308 = vmatprep.subr.mxu0 0.0
    %309 = vmatpush1.msra.mxu0 0.0
    %310 = vmatprep.subr.mxu0 0.0
    %311 = vmatpush1.msra.mxu0 0.0
    %312 = vmatprep.subr.mxu0 0.0
    %313 = vmatpush1.msra.mxu0 0.0
    %314 = vmatprep.subr.mxu0 0.0
    %315 = vmatpush1.msra.mxu0 0.0
    %316 = vmatprep.subr.mxu0 0.0
    %317 = vmatpush1.msra.mxu0 0.0
    %318 = vmatprep.subr.mxu0 0.0
    %319 = vmatpush1.msra.mxu0 0.0
    %320 = vmatprep.subr.mxu0 0.0
    %321 = vmatpush1.msra.mxu0 0.0
    %322 = vmatprep.subr.mxu0 0.0
    %323 = vmatpush1.msra.mxu0 0.0
    %324 = vmatprep.subr.mxu0 0.0
    %325 = vmatpush1.msra.mxu0 0.0
    %326 = vmatprep.subr.mxu0 0.0
    %327 = vmatpush1.msra.mxu0 0.0
    %328 = vmatprep.subr.mxu0 0.0
    %329 = vmatpush1.msra.mxu0 0.0
    %330 = vmatprep.subr.mxu0 0.0
    %331 = vmatpush1.msra.mxu0 0.0
    %332 = vmatprep.subr.mxu0 0.0
    %333 = vmatpush1.msra.mxu0 0.0
    %334 = vmatprep.subr.mxu0 0.0
    %335 = vmatpush1.msra.mxu0 0.0
    %336 = vmatprep.subr.mxu0 0.0
    %337 = vmatpush1.msra.mxu0 0.0
    %338 = vmatprep.subr.mxu0 0.0
    %339 = vmatpush1.msra.mxu0 0.0
    %340 = vmatprep.subr.mxu0 0.0
    %341 = vmatpush1.msra.mxu0 0.0
    %342 = vmatprep.subr.mxu0 0.0
    %343 = vmatpush1.msra.mxu0 0.0
    %344 = vmatprep.subr.mxu0 0.0
    %345 = vmatpush1.msra.mxu0 0.0
    %346 = vmatprep.subr.mxu0 0.0
    %347 = vmatpush1.msra.mxu0 0.0
    %348 = vmatprep.subr.mxu0 0.0
    %349 = vmatpush1.msra.mxu0 0.0
    %350 = vmatprep.subr.mxu0 0.0
    %351 = vmatpush1.msra.mxu0 0.0
    %352 = vmatprep.subr.mxu0 0.0
    %353 = vmatpush1.msra.mxu0 0.0
    %354 = vmatprep.subr.mxu0 0.0
    %355 = vmatpush1.msra.mxu0 0.0
    %356 = vmatprep.subr.mxu0 0.0
    %357 = vmatpush1.msra.mxu0 0.0
    %358 = vmatprep.subr.mxu0 0.0
    %359 = vmatpush1.msra.mxu0 0.0
    %360 = vmatprep.mubr.f32.mxu0 0.0
    %361 = vmatmul.mubr.f32.gmra.mrb[0].mxu0 %v244
    %v362 = vpop.f32.mrb[0].mxu0
    %v363 = vadd.f32 %v233, %v362
    %v364 = vpop.f32.mrb[0].mxu0
    %v365 = vadd.f32 %v237, %v364
    %366 = vmatprep.mubr.f32.mxu0 0.0
    %367 = vmatmul.mubr.f32.gmra.mrb[0].mxu0 %v247
    %v368 = vpop.f32.mrb[0].mxu0
    %v369 = vadd.f32 %v233, %v368
    %v370 = vpop.f32.mrb[0].mxu0
    %v371 = vadd.f32 %v237, %v370
    %372 = vmatprep.mubr.f32.mxu0 0.0
    %373 = vmatmul.mubr.f32.gmra.mrb[0].mxu0 %v250
    %v374 = vpop.f32.mrb[0].mxu0
    %v375 = vadd.f32 %v233, %v374
    %v376 = vpop.f32.mrb[0].mxu0
    %v377 = vadd.f32 %v237, %v376
    %378 = vmatprep.mubr.f32.mxu0 0.0
    %379 = vmatmul.mubr.f32.gmra.mrb[0].mxu0 %v253
    %v380 = vpop.f32.mrb[0].mxu0
    %v381 = vadd.f32 %v233, %v380
    %v382 = vpop.f32.mrb[0].mxu0
    %v383 = vadd.f32 %v237, %v382
    %384 = vmatprep.mubr.f32.mxu0 0.0
    %385 = vmatmul.mubr.f32.gmra.mrb[0].mxu0 %v256
    %v386 = vpop.f32.mrb[0].mxu0
    %v387 = vadd.f32 %v233, %v386
    %v388 = vpop.f32.mrb[0].mxu0
    %v389 = vadd.f32 %v237, %v388
    %390 = vmatprep.mubr.f32.mxu0 0.0
    %391 = vmatmul.mubr.f32.gmra.mrb[0].mxu0 %v259
    %v392 = vpop.f32.mrb[0].mxu0
    %v393 = vadd.f32 %v233, %v392
    %v394 = vpop.f32.mrb[0].mxu0
    %v395 = vadd.f32 %v237, %v394
    %396 = vmatprep.mubr.f32.mxu0 0.0
    %397 = vmatmul.mubr.f32.gmra.mrb[0].mxu0 %v262
    %v398 = vpop.f32.mrb[0].mxu0
    %v399 = vadd.f32 %v233, %v398
    %v400 = vpop.f32.mrb[0].mxu0
    %v401 = vadd.f32 %v237, %v400
    %402 = vmatprep.mubr.f32.mxu0 0.0
    %403 = vmatmul.mubr.f32.gmra.mrb[0].mxu0 %v265
    %v404 = vpop.f32.mrb[0].mxu0
    %v405 = vadd.f32 %v233, %v404
    %v406 = vpop.f32.mrb[0].mxu0
    %v407 = vadd.f32 %v237, %v406
    %408 = vmatprep.mubr.f32.mxu0 0.0
    %409 = vmatmul.mubr.f32.gmra.mrb[0].mxu0 %v268
    %v410 = vpop.f32.mrb[0].mxu0
    %v411 = vadd.f32 %v233, %v410
    %v412 = vpop.f32.mrb[0].mxu0
    %v413 = vadd.f32 %v237, %v412
    %414 = vmatprep.mubr.f32.mxu0 0.0
    %415 = vmatmul.mubr.f32.gmra.mrb[0].mxu0 %v271
    %v416 = vpop.f32.mrb[0].mxu0
    %v417 = vadd.f32 %v233, %v416
    %v418 = vpop.f32.mrb[0].mxu0
    %v419 = vadd.f32 %v237, %v418
    %420 = vmatprep.mubr.f32.mxu0 0.0
    %421 = vmatmul.mubr.f32.gmra.mrb[0].mxu0 %v274
    %v422 = vpop.f32.mrb[0].mxu0
    %v423 = vadd.f32 %v233, %v422
    %v424 = vpop.f32.mrb[0].mxu0
    %v425 = vadd.f32 %v237, %v424
    %426 = vmatprep.mubr.f32.mxu0 0.0
    %427 = vmatmul.mubr.f32.gmra.mrb[0].mxu0 %v277
    %v428 = vpop.f32.mrb[0].mxu0
    %v429 = vadd.f32 %v233, %v428
    %v430 = vpop.f32.mrb[0].mxu0
    %v431 = vadd.f32 %v237, %v430
    %432 = vmatprep.mubr.f32.mxu0 0.0
    %433 = vmatmul.mubr.f32.gmra.mrb[0].mxu0 %v280
    %v434 = vpop.f32.mrb[0].mxu0
    %v435 = vadd.f32 %v233, %v434
    %v436 = vpop.f32.mrb[0].mxu0
    %v437 = vadd.f32 %v237, %v436
    %438 = vmatprep.mubr.f32.mxu0 0.0
    %439 = vmatmul.mubr.f32.gmra.mrb[0].mxu0 %v283
    %v440 = vpop.f32.mrb[0].mxu0
    %v441 = vadd.f32 %v233, %v440
    %v442 = vpop.f32.mrb[0].mxu0
    %v443 = vadd.f32 %v237, %v442
    %444 = vmatprep.mubr.f32.mxu0 0.0
    %445 = vmatmul.mubr.f32.gmra.mrb[0].mxu0 %v286
    %v446 = vpop.f32.mrb[0].mxu0
    %v447 = vadd.f32 %v233, %v446
    %v448 = vpop.f32.mrb[0].mxu0
    %v449 = vadd.f32 %v237, %v448
    %450 = vmatprep.mubr.f32.mxu0 0.0
    %451 = vmatmul.mubr.f32.gmra.mrb[0].mxu0 %v289
    %v452 = vpop.f32.mrb[0].mxu0
    %v453 = vadd.f32 %v233, %v452
    %v454 = vpop.f32.mrb[0].mxu0
    %v455 = vadd.f32 %v237, %v454
    %456 = vdwg.mxu0
    %v457 = vmax.f32 %v363, 0.0
    %v458 = vmax.f32 %v365, 0.0
    %v459 = vmax.f32 %v369, 0.0
    %v460 = vmax.f32 %v371, 0.0
    %v461 = vmax.f32 %v375, 0.0
    %v462 = vmax.f32 %v377, 0.0
    %v463 = vmax.f32 %v381, 0.0
    %v464 = vmax.f32 %v383, 0.0
    %v465 = vmax.f32 %v387, 0.0
    %v466 = vmax.f32 %v389, 0.0
    %v467 = vmax.f32 %v393, 0.0
    %v468 = vmax.f32 %v395, 0.0
    %v469 = vmax.f32 %v399, 0.0
    %v470 = vmax.f32 %v401, 0.0
    %v471 = vmax.f32 %v405, 0.0
    %v472 = vmax.f32 %v407, 0.0
    %v473 = vmax.f32 %v411, 0.0
    %v474 = vmax.f32 %v413, 0.0
    %v475 = vmax.f32 %v417, 0.0
    %v476 = vmax.f32 %v419, 0.0
    %v477 = vmax.f32 %v423, 0.0
    %v478 = vmax.f32 %v425, 0.0
    %v479 = vmax.f32 %v429, 0.0
    %v480 = vmax.f32 %v431, 0.0
    %v481 = vmax.f32 %v435, 0.0
    %v482 = vmax.f32 %v437, 0.0
    %v483 = vmax.f32 %v441, 0.0
    %v484 = vmax.f32 %v443, 0.0
    %v485 = vmax.f32 %v447, 0.0
    %v486 = vmax.f32 %v449, 0.0
    %v487 = vmax.f32 %v453, 0.0
    %v488 = vmax.f32 %v455, 0.0
    %v489 = vld [vmem:[#allocation2] sm:$0xff]
    %v490 = vld [vmem:[#allocation2 + $0x8] sm:$0xff]
    %v491 = vld [vmem:[#allocation2 + $0x10] sm:$0xff]
    %v492 = vld [vmem:[#allocation2 + $0x18] sm:$0xff]
    %v493 = vld [vmem:[#allocation2 + $0x20] sm:$0xff]
    %v494 = vld [vmem:[#allocation2 + $0x28] sm:$0xff]
    %v495 = vld [vmem:[#allocation2 + $0x30] sm:$0xff]
    %v496 = vld [vmem:[#allocation2 + $0x38] sm:$0xff]
    %v497 = vld [vmem:[#allocation2 + $0x40] sm:$0xff]
    %v498 = vld [vmem:[#allocation2 + $0x48] sm:$0xff]
    %v499 = vld [vmem:[#allocation2 + $0x50] sm:$0xff]
    %v500 = vld [vmem:[#allocation2 + $0x58] sm:$0xff]
    %v501 = vld [vmem:[#allocation2 + $0x60] sm:$0xff]
    %v502 = vld [vmem:[#allocation2 + $0x68] sm:$0xff]
    %v503 = vld [vmem:[#allocation2 + $0x70] sm:$0xff]
    %v504 = vld [vmem:[#allocation2 + $0x78] sm:$0xff]
    %v505 = vld [vmem:[#allocation2 + $0x80] sm:$0xff]
    %v506 = vld [vmem:[#allocation2 + $0x88] sm:$0xff]
    %v507 = vld [vmem:[#allocation2 + $0x90] sm:$0xff]
    %v508 = vld [vmem:[#allocation2 + $0x98] sm:$0xff]
    %v509 = vld [vmem:[#allocation2 + $0xa0] sm:$0xff]
    %v510 = vld [vmem:[#allocation2 + $0xa8] sm:$0xff]
    %v511 = vld [vmem:[#allocation2 + $0xb0] sm:$0xff]
    %v512 = vld [vmem:[#allocation2 + $0xb8] sm:$0xff]
    %v513 = vld [vmem:[#allocation2 + $0xc0] sm:$0xff]
    %v514 = vld [vmem:[#allocation2 + $0xc8] sm:$0xff]
    %v515 = vld [vmem:[#allocation2 + $0xd0] sm:$0xff]
    %v516 = vld [vmem:[#allocation2 + $0xd8] sm:$0xff]
    %v517 = vld [vmem:[#allocation2 + $0xe0] sm:$0xff]
    %v518 = vld [vmem:[#allocation2 + $0xe8] sm:$0xff]
    %v519 = vld [vmem:[#allocation2 + $0xf0] sm:$0xff]
    %v520 = vld [vmem:[#allocation2 + $0xf8] sm:$0xff]
    %v521 = vld [vmem:[#allocation2 + $0x100] sm:$0xff]
    %v522 = vld [vmem:[#allocation2 + $0x108] sm:$0xff]
    %v523 = vld [vmem:[#allocation2 + $0x110] sm:$0xff]
    %v524 = vld [vmem:[#allocation2 + $0x118] sm:$0xff]
    %v525 = vld [vmem:[#allocation2 + $0x120] sm:$0x3f]
    %v526 = vld [vmem:[#allocation2 + $0x128] sm:$0x3f]
    %vm527 = vcmask 179200
    %v529 = vsel %vm527, %v458, 0
    %v532 = vsel %vm527, %v460, 0
    %v535 = vsel %vm527, %v462, 0
    %v538 = vsel %vm527, %v464, 0
    %v541 = vsel %vm527, %v466, 0
    %v544 = vsel %vm527, %v468, 0
    %v547 = vsel %vm527, %v470, 0
    %v550 = vsel %vm527, %v472, 0
    %v553 = vsel %vm527, %v474, 0
    %v556 = vsel %vm527, %v476, 0
    %v559 = vsel %vm527, %v478, 0
    %v562 = vsel %vm527, %v480, 0
    %v565 = vsel %vm527, %v482, 0
    %v568 = vsel %vm527, %v484, 0
    %v571 = vsel %vm527, %v486, 0
    %v574 = vsel %vm527, %v488, 0
    %vm576 = vcmask 1045504
    %v578 = vsel %vm576, %v525, 0
    %v581 = vsel %vm576, %v526, 0
    %583 = vmatprep.subr.mxu0 %v490
    %584 = vmatpush1.msra.mxu0 %v489
    %585 = vmatprep.subr.mxu0 %v492
    %586 = vmatpush1.msra.mxu0 %v491
    %587 = vmatprep.subr.mxu0 %v494
    %588 = vmatpush1.msra.mxu0 %v493
    %589 = vmatprep.subr.mxu0 %v496
    %590 = vmatpush1.msra.mxu0 %v495
    %591 = vmatprep.subr.mxu0 %v498
    %592 = vmatpush1.msra.mxu0 %v497
    %593 = vmatprep.subr.mxu0 %v500
    %594 = vmatpush1.msra.mxu0 %v499
    %595 = vmatprep.subr.mxu0 %v502
    %596 = vmatpush1.msra.mxu0 %v501
    %597 = vmatprep.subr.mxu0 %v504
    %598 = vmatpush1.msra.mxu0 %v503
    %599 = vmatprep.subr.mxu0 %v506
    %600 = vmatpush1.msra.mxu0 %v505
    %601 = vmatprep.subr.mxu0 %v508
    %602 = vmatpush1.msra.mxu0 %v507
    %603 = vmatprep.subr.mxu0 %v510
    %604 = vmatpush1.msra.mxu0 %v509
    %605 = vmatprep.subr.mxu0 %v512
    %606 = vmatpush1.msra.mxu0 %v511
    %607 = vmatprep.subr.mxu0 %v514
    %608 = vmatpush1.msra.mxu0 %v513
    %609 = vmatprep.subr.mxu0 %v516
    %610 = vmatpush1.msra.mxu0 %v515
    %611 = vmatprep.subr.mxu0 %v518
    %612 = vmatpush1.msra.mxu0 %v517
    %613 = vmatprep.subr.mxu0 %v520
    %614 = vmatpush1.msra.mxu0 %v519
    %615 = vmatprep.subr.mxu0 %v522
    %616 = vmatpush1.msra.mxu0 %v521
    %617 = vmatprep.subr.mxu0 %v524
    %618 = vmatpush1.msra.mxu0 %v523
    %619 = vmatprep.subr.mxu0 %v581
    %620 = vmatpush1.msra.mxu0 %v578
    %621 = vmatprep.subr.mxu0 0.0
    %622 = vmatpush1.msra.mxu0 0.0
    %623 = vmatprep.subr.mxu0 0.0
    %624 = vmatpush1.msra.mxu0 0.0
    %625 = vmatprep.subr.mxu0 0.0
    %626 = vmatpush1.msra.mxu0 0.0
    %627 = vmatprep.subr.mxu0 0.0
    %628 = vmatpush1.msra.mxu0 0.0
    %629 = vmatprep.subr.mxu0 0.0
    %630 = vmatpush1.msra.mxu0 0.0
    %631 = vmatprep.subr.mxu0 0.0
    %632 = vmatpush1.msra.mxu0 0.0
    %633 = vmatprep.subr.mxu0 0.0
    %634 = vmatpush1.msra.mxu0 0.0
    %635 = vmatprep.subr.mxu0 0.0
    %636 = vmatpush1.msra.mxu0 0.0
    %637 = vmatprep.subr.mxu0 0.0
    %638 = vmatpush1.msra.mxu0 0.0
    %639 = vmatprep.subr.mxu0 0.0
    %640 = vmatpush1.msra.mxu0 0.0
    %641 = vmatprep.subr.mxu0 0.0
    %642 = vmatpush1.msra.mxu0 0.0
    %643 = vmatprep.subr.mxu0 0.0
    %644 = vmatpush1.msra.mxu0 0.0
    %645 = vmatprep.subr.mxu0 0.0
    %646 = vmatpush1.msra.mxu0 0.0
    %647 = vmatprep.mubr.f32.mxu0 %v529
    %648 = vmatmul.mubr.f32.gmra.mrb[0].mxu0 %v457
    %v649 = vpop.f32.mrb[0].mxu0
    %v650 = vadd.f32 0.0, %v649
    %v651 = vpop.f32.mrb[0].mxu0
    %v652 = vadd.f32 0.0, %v651
    %653 = vmatprep.mubr.f32.mxu0 %v532
    %654 = vmatmul.mubr.f32.gmra.mrb[0].mxu0 %v459
    %v655 = vpop.f32.mrb[0].mxu0
    %v656 = vadd.f32 0.0, %v655
    %v657 = vpop.f32.mrb[0].mxu0
    %v658 = vadd.f32 0.0, %v657
    %659 = vmatprep.mubr.f32.mxu0 %v535
    %660 = vmatmul.mubr.f32.gmra.mrb[0].mxu0 %v461
    %v661 = vpop.f32.mrb[0].mxu0
    %v662 = vadd.f32 0.0, %v661
    %v663 = vpop.f32.mrb[0].mxu0
    %v664 = vadd.f32 0.0, %v663
    %665 = vmatprep.mubr.f32.mxu0 %v538
    %666 = vmatmul.mubr.f32.gmra.mrb[0].mxu0 %v463
    %v667 = vpop.f32.mrb[0].mxu0
    %v668 = vadd.f32 0.0, %v667
    %v669 = vpop.f32.mrb[0].mxu0
    %v670 = vadd.f32 0.0, %v669
    %671 = vmatprep.mubr.f32.mxu0 %v541
    %672 = vmatmul.mubr.f32.gmra.mrb[0].mxu0 %v465
    %v673 = vpop.f32.mrb[0].mxu0
    %v674 = vadd.f32 0.0, %v673
    %v675 = vpop.f32.mrb[0].mxu0
    %v676 = vadd.f32 0.0, %v675
    %677 = vmatprep.mubr.f32.mxu0 %v544
    %678 = vmatmul.mubr.f32.gmra.mrb[0].mxu0 %v467
    %v679 = vpop.f32.mrb[0].mxu0
    %v680 = vadd.f32 0.0, %v679
    %v681 = vpop.f32.mrb[0].mxu0
    %v682 = vadd.f32 0.0, %v681
    %683 = vmatprep.mubr.f32.mxu0 %v547
    %684 = vmatmul.mubr.f32.gmra.mrb[0].mxu0 %v469
    %v685 = vpop.f32.mrb[0].mxu0
    %v686 = vadd.f32 0.0, %v685
    %v687 = vpop.f32.mrb[0].mxu0
    %v688 = vadd.f32 0.0, %v687
    %689 = vmatprep.mubr.f32.mxu0 %v550
    %690 = vmatmul.mubr.f32.gmra.mrb[0].mxu0 %v471
    %v691 = vpop.f32.mrb[0].mxu0
    %v692 = vadd.f32 0.0, %v691
    %v693 = vpop.f32.mrb[0].mxu0
    %v694 = vadd.f32 0.0, %v693
    %695 = vmatprep.mubr.f32.mxu0 %v553
    %696 = vmatmul.mubr.f32.gmra.mrb[0].mxu0 %v473
    %v697 = vpop.f32.mrb[0].mxu0
    %v698 = vadd.f32 0.0, %v697
    %v699 = vpop.f32.mrb[0].mxu0
    %v700 = vadd.f32 0.0, %v699
    %701 = vmatprep.mubr.f32.mxu0 %v556
    %702 = vmatmul.mubr.f32.gmra.mrb[0].mxu0 %v475
    %v703 = vpop.f32.mrb[0].mxu0
    %v704 = vadd.f32 0.0, %v703
    %v705 = vpop.f32.mrb[0].mxu0
    %v706 = vadd.f32 0.0, %v705
    %707 = vmatprep.mubr.f32.mxu0 %v559
    %708 = vmatmul.mubr.f32.gmra.mrb[0].mxu0 %v477
    %v709 = vpop.f32.mrb[0].mxu0
    %v710 = vadd.f32 0.0, %v709
    %v711 = vpop.f32.mrb[0].mxu0
    %v712 = vadd.f32 0.0, %v711
    %713 = vmatprep.mubr.f32.mxu0 %v562
    %714 = vmatmul.mubr.f32.gmra.mrb[0].mxu0 %v479
    %v715 = vpop.f32.mrb[0].mxu0
    %v716 = vadd.f32 0.0, %v715
    %v717 = vpop.f32.mrb[0].mxu0
    %v718 = vadd.f32 0.0, %v717
    %719 = vmatprep.mubr.f32.mxu0 %v565
    %720 = vmatmul.mubr.f32.gmra.mrb[0].mxu0 %v481
    %v721 = vpop.f32.mrb[0].mxu0
    %v722 = vadd.f32 0.0, %v721
    %v723 = vpop.f32.mrb[0].mxu0
    %v724 = vadd.f32 0.0, %v723
    %725 = vmatprep.mubr.f32.mxu0 %v568
    %726 = vmatmul.mubr.f32.gmra.mrb[0].mxu0 %v483
    %v727 = vpop.f32.mrb[0].mxu0
    %v728 = vadd.f32 0.0, %v727
    %v729 = vpop.f32.mrb[0].mxu0
    %v730 = vadd.f32 0.0, %v729
    %731 = vmatprep.mubr.f32.mxu0 %v571
    %732 = vmatmul.mubr.f32.gmra.mrb[0].mxu0 %v485
    %v733 = vpop.f32.mrb[0].mxu0
    %v734 = vadd.f32 0.0, %v733
    %v735 = vpop.f32.mrb[0].mxu0
    %v736 = vadd.f32 0.0, %v735
    %737 = vmatprep.mubr.f32.mxu0 %v574
    %738 = vmatmul.mubr.f32.gmra.mrb[0].mxu0 %v487
    %v739 = vpop.f32.mrb[0].mxu0
    %v740 = vadd.f32 0.0, %v739
    %v741 = vpop.f32.mrb[0].mxu0
    %v742 = vadd.f32 0.0, %v741
    %743 = vdwg.mxu0
    %v744 = vpack.c.bf16 %v658, %v652
    %v745 = vpack.c.bf16 %v670, %v664
    %v746 = vpack.c.bf16 %v682, %v676
    %v747 = vpack.c.bf16 %v694, %v688
    %v748 = vpack.c.bf16 %v706, %v700
    %v749 = vpack.c.bf16 %v718, %v712
    %v750 = vpack.c.bf16 %v730, %v724
    %v751 = vpack.c.bf16 %v742, %v736
    %v752 = vld [vmem:[%s1] sm:$0xf]
    %v753 = vld [vmem:[%s1 + $0x4] sm:$0xf]
    %v754 = vld [vmem:[%s1 + $0x8] sm:$0xf]
    %v755 = vld [vmem:[%s1 + $0xc] sm:$0xf]
    %v756 = vld [vmem:[%s1 + $0x10] sm:$0xf]
    %v757 = vld [vmem:[%s1 + $0x14] sm:$0xf]
    %v758 = vld [vmem:[%s1 + $0x18] sm:$0xf]
    %v759 = vld [vmem:[%s1 + $0x1c] sm:$0xf]
    %v760 = vld [vmem:[%s1 + $0x20] sm:$0xf]
    %v761 = vld [vmem:[%s1 + $0x24] sm:$0xf]
    %v762 = vld [vmem:[%s1 + $0x28] sm:$0xf]
    %v763 = vld [vmem:[%s1 + $0x2c] sm:$0xf]
    %v764 = vld [vmem:[%s1 + $0x30] sm:$0xf]
    %v765 = vld [vmem:[%s1 + $0x34] sm:$0xf]
    %v766 = vld [vmem:[%s1 + $0x38] sm:$0xf]
    %v767 = vld [vmem:[%s1 + $0x3c] sm:$0xf]
    %v784 = vunpack.c.l.b16 %v752
    %v785 = vunpack.c.l.b16 %v753
    %v786 = vunpack.c.l.b16 %v754
    %v787 = vunpack.c.l.b16 %v755
    %v788 = vunpack.c.l.b16 %v756
    %v789 = vunpack.c.l.b16 %v757
    %v790 = vunpack.c.l.b16 %v758
    %v791 = vunpack.c.l.b16 %v759
    %v792 = vunpack.c.l.b16 %v760
    %v793 = vunpack.c.l.b16 %v761
    %v794 = vunpack.c.l.b16 %v762
    %v795 = vunpack.c.l.b16 %v763
    %v796 = vunpack.c.l.b16 %v764
    %v797 = vunpack.c.l.b16 %v765
    %v798 = vunpack.c.l.b16 %v766
    %v799 = vunpack.c.l.b16 %v767
    %v800 = vpack.c.b16 %v785, %v784
    %v801 = vpack.c.b16 %v787, %v786
    %v802 = vpack.c.b16 %v789, %v788
    %v803 = vpack.c.b16 %v791, %v790
    %v804 = vpack.c.b16 %v793, %v792
    %v805 = vpack.c.b16 %v795, %v794
    %v806 = vpack.c.b16 %v797, %v796
    %v807 = vpack.c.b16 %v799, %v798
    %816 = vmatprep.subr.bf16.mxu0 0
    %817 = vmatpush1.bf16.msra.mxu0 %v744
    %818 = vmatprep.subr.bf16.mxu0 0
    %819 = vmatpush1.bf16.msra.mxu0 %v745
    %820 = vmatprep.subr.bf16.mxu0 0
    %821 = vmatpush1.bf16.msra.mxu0 %v746
    %822 = vmatprep.subr.bf16.mxu0 0
    %823 = vmatpush1.bf16.msra.mxu0 %v747
    %824 = vmatprep.subr.bf16.mxu0 0
    %825 = vmatpush1.bf16.msra.mxu0 %v748
    %826 = vmatprep.subr.bf16.mxu0 0
    %827 = vmatpush1.bf16.msra.mxu0 %v749
    %828 = vmatprep.subr.bf16.mxu0 0
    %829 = vmatpush1.bf16.msra.mxu0 %v750
    %830 = vmatprep.subr.bf16.mxu0 0
    %831 = vmatpush1.bf16.msra.mxu0 %v751
    %832 = vmatprep.subr.bf16.mxu0 0
    %833 = vmatpush1.bf16.msra.mxu0 0
    %834 = vmatprep.subr.bf16.mxu0 0
    %835 = vmatpush1.bf16.msra.mxu0 0
    %836 = vmatprep.subr.bf16.mxu0 0
    %837 = vmatpush1.bf16.msra.mxu0 0
    %838 = vmatprep.subr.bf16.mxu0 0
    %839 = vmatpush1.bf16.msra.mxu0 0
    %840 = vmatprep.subr.bf16.mxu0 0
    %841 = vmatpush1.bf16.msra.mxu0 0
    %842 = vmatprep.subr.bf16.mxu0 0
    %843 = vmatpush1.bf16.msra.mxu0 0
    %844 = vmatprep.subr.bf16.mxu0 0
    %845 = vmatpush1.bf16.msra.mxu0 0
    %846 = vmatprep.subr.bf16.mxu0 0
    %847 = vmatpush1.bf16.msra.mxu0 0
    %848 = vmatprep.mubr.bf16.mxu0 0
    %849 = vmatmul.mubr.bf16.gmra.mrb[0].mxu0 %v800
    %v850 = vpop.f32.mrb[0].mxu0
    %v851 = vadd.f32 0.0, %v850
    %v852 = vpop.f32.mrb[0].mxu0
    %v853 = vpop.f32.mrb[0].mxu0
    %v854 = vadd.f32 0.0, %v853
    %v855 = vpop.f32.mrb[0].mxu0
    %856 = vmatprep.mubr.bf16.mxu0 0
    %857 = vmatmul.mubr.bf16.gmra.mrb[0].mxu0 %v801
    %v858 = vpop.f32.mrb[0].mxu0
    %v859 = vadd.f32 0.0, %v858
    %v860 = vpop.f32.mrb[0].mxu0
    %v861 = vpop.f32.mrb[0].mxu0
    %v862 = vadd.f32 0.0, %v861
    %v863 = vpop.f32.mrb[0].mxu0
    %864 = vmatprep.mubr.bf16.mxu0 0
    %865 = vmatmul.mubr.bf16.gmra.mrb[0].mxu0 %v802
    %v866 = vpop.f32.mrb[0].mxu0
    %v867 = vadd.f32 0.0, %v866
    %v868 = vpop.f32.mrb[0].mxu0
    %v869 = vpop.f32.mrb[0].mxu0
    %v870 = vadd.f32 0.0, %v869
    %v871 = vpop.f32.mrb[0].mxu0
    %872 = vmatprep.mubr.bf16.mxu0 0
    %873 = vmatmul.mubr.bf16.gmra.mrb[0].mxu0 %v803
    %v874 = vpop.f32.mrb[0].mxu0
    %v875 = vadd.f32 0.0, %v874
    %v876 = vpop.f32.mrb[0].mxu0
    %v877 = vpop.f32.mrb[0].mxu0
    %v878 = vadd.f32 0.0, %v877
    %v879 = vpop.f32.mrb[0].mxu0
    %880 = vmatprep.mubr.bf16.mxu0 0
    %881 = vmatmul.mubr.bf16.gmra.mrb[0].mxu0 %v804
    %v882 = vpop.f32.mrb[0].mxu0
    %v883 = vadd.f32 0.0, %v882
    %v884 = vpop.f32.mrb[0].mxu0
    %v885 = vpop.f32.mrb[0].mxu0
    %v886 = vadd.f32 0.0, %v885
    %v887 = vpop.f32.mrb[0].mxu0
    %888 = vmatprep.mubr.bf16.mxu0 0
    %889 = vmatmul.mubr.bf16.gmra.mrb[0].mxu0 %v805
    %v890 = vpop.f32.mrb[0].mxu0
    %v891 = vadd.f32 0.0, %v890
    %v892 = vpop.f32.mrb[0].mxu0
    %v893 = vpop.f32.mrb[0].mxu0
    %v894 = vadd.f32 0.0, %v893
    %v895 = vpop.f32.mrb[0].mxu0
    %896 = vmatprep.mubr.bf16.mxu0 0
    %897 = vmatmul.mubr.bf16.gmra.mrb[0].mxu0 %v806
    %v898 = vpop.f32.mrb[0].mxu0
    %v899 = vadd.f32 0.0, %v898
    %v900 = vpop.f32.mrb[0].mxu0
    %v901 = vpop.f32.mrb[0].mxu0
    %v902 = vadd.f32 0.0, %v901
    %v903 = vpop.f32.mrb[0].mxu0
    %904 = vmatprep.mubr.bf16.mxu0 0
    %905 = vmatmul.mubr.bf16.gmra.mrb[0].mxu0 %v807
    %v906 = vpop.f32.mrb[0].mxu0
    %v907 = vadd.f32 0.0, %v906
    %v908 = vpop.f32.mrb[0].mxu0
    %v909 = vpop.f32.mrb[0].mxu0
    %v910 = vadd.f32 0.0, %v909
    %v911 = vpop.f32.mrb[0].mxu0
    %912 = vdwg.mxu0
    %v913 = vadd.f32 %v650, %v851
    %v914 = vadd.f32 %v656, %v854
    %v915 = vadd.f32 %v662, %v859
    %v916 = vadd.f32 %v668, %v862
    %v917 = vadd.f32 %v674, %v867
    %v918 = vadd.f32 %v680, %v870
    %v919 = vadd.f32 %v686, %v875
    %v920 = vadd.f32 %v692, %v878
    %v921 = vadd.f32 %v698, %v883
    %v922 = vadd.f32 %v704, %v886
    %v923 = vadd.f32 %v710, %v891
    %v924 = vadd.f32 %v716, %v894
    %v925 = vadd.f32 %v722, %v899
    %v926 = vadd.f32 %v728, %v902
    %v927 = vadd.f32 %v734, %v907
    %v928 = vadd.f32 %v740, %v910
    %v929 = vld [vmem:[%s6] sm:$0x1]
    %v931 = vlaneseq
    %v932 = vshrl.u32 %v931, 7
    %v933 = vsub.s32 0, %v932
    %v934 = vrot.slane %v929, %v933
    %v936 = vadd.f32 %v913, %v934
    %v937 = vadd.f32 %v914, %v934
    %v938 = vadd.f32 %v915, %v934
    %v939 = vadd.f32 %v916, %v934
    %v940 = vadd.f32 %v917, %v934
    %v941 = vadd.f32 %v918, %v934
    %v942 = vadd.f32 %v919, %v934
    %v943 = vadd.f32 %v920, %v934
    %v944 = vadd.f32 %v921, %v934
    %v945 = vadd.f32 %v922, %v934
    %v946 = vadd.f32 %v923, %v934
    %v947 = vadd.f32 %v924, %v934
    %v948 = vadd.f32 %v925, %v934
    %v949 = vadd.f32 %v926, %v934
    %v950 = vadd.f32 %v927, %v934
    %v951 = vadd.f32 %v928, %v934
    %952 = vst [vmem:[#allocation5] sm:$0xff] %v936
    %953 = vst [vmem:[#allocation5 + $0x8] sm:$0xff] %v937
    %954 = vst [vmem:[#allocation5 + $0x10] sm:$0xff] %v938
    %955 = vst [vmem:[#allocation5 + $0x18] sm:$0xff] %v939
    %956 = vst [vmem:[#allocation5 + $0x20] sm:$0xff] %v940
    %957 = vst [vmem:[#allocation5 + $0x28] sm:$0xff] %v941
    %958 = vst [vmem:[#allocation5 + $0x30] sm:$0xff] %v942
    %959 = vst [vmem:[#allocation5 + $0x38] sm:$0xff] %v943
    %960 = vst [vmem:[#allocation5 + $0x40] sm:$0xff] %v944
    %961 = vst [vmem:[#allocation5 + $0x48] sm:$0xff] %v945
    %962 = vst [vmem:[#allocation5 + $0x50] sm:$0xff] %v946
    %963 = vst [vmem:[#allocation5 + $0x58] sm:$0xff] %v947
    %964 = vst [vmem:[#allocation5 + $0x60] sm:$0xff] %v948
    %965 = vst [vmem:[#allocation5 + $0x68] sm:$0xff] %v949
    %966 = vst [vmem:[#allocation5 + $0x70] sm:$0xff] %v950
    %967 = vst [vmem:[#allocation5 + $0x78] sm:$0xff] %v951
    // Predicated region
    $region34: #{tpu_custom_call.1} parent=1 // pred_check
      _
    $region35: #{tpu_custom_call.1} parent=1 // pred_check_branch
      %969 = sbr.rel (0) target = $region37
    $region36: #{tpu_custom_call.1} parent=1 // pred_region
      %s971 = ssub.s32 2048, 2048
      %972 = vsyncadd [#allocation4], %s971
      %s973 = sshll.u32 [#allocation5], 4
      %s974 = int_to_ptr.vmem [resolvable:$true] %s973
      %979 = dma.vmem_to_hbm [thread:$0]  %s974, 2048, %s7, [#allocation4], 128, 128, 8
    $region37: #{tpu_custom_call.1} parent=1 // pred_fallthru
      _
    // Predicated region
    $region38: #{tpu_custom_call.1} parent=1 // pred_check
      _
    $region39: #{tpu_custom_call.1} parent=1 // pred_check_branch
      %981 = sbr.rel (0) target = $region41
    $region40: #{tpu_custom_call.1} parent=1 // pred_region
      %982 = dma.done [#allocation4], 2048
    $region41: #{tpu_custom_call.1} parent=1 // pred_fallthru
      _
    %983 = vsyncpa [#allocation3], 1
    %984 = vsyncpa [#allocation4], 1

</llo_original>
